<compile_context>
chip_gen: v7x
topology: tpu7x:2x2x1
jax: 0.10.0
libtpu: 0.0.40
codegen_flags: <defaults>
</compile_context>

<pallas_src>
import functools
import math

import jax
import jax.numpy as jnp
from jax import lax
from jax.experimental import pallas as pl
from jax.experimental.pallas import tpu as pltpu


def _arcface_kernel(flag_ref, x_ref, w_ref, sx_ref, iw_ref, lab_ref, o_ref, *,
                    s, inv_s, cos_m, sin_m, th, mm, block_c):
    i = pl.program_id(0)
    j = pl.program_id(1)
    grid_c = pl.num_programs(1)

    # MXU: raw dot product contracting the LAST dim of both tiles (no transpose).
    raw = lax.dot_general(x_ref[...], w_ref[...],
                          dimension_numbers=(((1,), (1,)), ((), ())),
                          preferred_element_type=jnp.float32)          # (TB, TC)

    # Folded scaling: sx = s / ||x_row||, iw = 1 / ||w_row||  ->  scaled = s*cosine.
    scaled = raw * sx_ref[...] * iw_ref[...]                           # (TB, TC)

    has_label = flag_ref[i * grid_c + j] > 0

    @pl.when(has_label)
    def _():
        # Arc-margin epilogue only when this C-tile contains a label column.
        iota = lax.broadcasted_iota(jnp.int32, scaled.shape, 1)
        one_hot = iota == (lab_ref[...] - j * block_c)                 # (TB, TC)
        tgt_s = jnp.sum(jnp.where(one_hot, scaled, 0.0), axis=-1, keepdims=True)
        tgt = tgt_s * inv_s                                            # unscaled cosine
        sine = jnp.sqrt(jnp.clip(1.0 - tgt * tgt, 0.0, 1.0))
        phi = tgt * cos_m - sine * sin_m
        phi = jnp.where(tgt > th, phi, tgt - mm)
        delta = s * phi - tgt_s                                        # (TB, 1)
        o_ref[...] = (scaled + jnp.where(one_hot, delta, 0.0)).astype(o_ref.dtype)

    @pl.when(jnp.logical_not(has_label))
    def _():
        o_ref[...] = scaled.astype(o_ref.dtype)


def _round_up(n, m):
    return (n + m - 1) // m * m


def _shrink(v, step):
    return max(step, (v // 2) // step * step)


def _derive_tiles(B, C, D, itemsize):
    """Largest lane-dense tiles whose double-buffered working set fits ~40 MiB."""
    block_b = min(_round_up(B, 8), 512)
    block_c = min(_round_up(C, 128), 1024)

    def vmem_bytes(tb, tc):
        return (2 * tb * D * itemsize      # x tiles (double-buffered)
                + 2 * tc * D * itemsize    # W tiles (double-buffered)
                + 2 * tb * tc * 4          # output tiles (f32, double-buffered)
                + 3 * tb * tc * 4)         # in-kernel f32/int32 temporaries

    budget = 40 * 1024 * 1024
    while block_c > 128 and vmem_bytes(block_b, block_c) > budget:
        block_c = _shrink(block_c, 128)
    while block_b > 8 and vmem_bytes(block_b, block_c) > budget:
        block_b = _shrink(block_b, 8)
    return block_b, block_c


def arcface_forward(x, label, weight, *, s=30.0, m=0.5,
                    block_b=None, block_c=None,
                    mxu_dtype=jnp.bfloat16, out_dtype=jnp.float32):
    """ArcFace forward.  x: (B, D), label: (B,) int, weight: (C, D) -> (B, C)."""
    B, D = x.shape
    C, D2 = weight.shape
    assert D == D2
    itemsize = jnp.dtype(mxu_dtype).itemsize

    auto_b, auto_c = block_b is None, block_c is None
    db, dc = _derive_tiles(B, C, D, itemsize)
    if auto_b:
        block_b = db
    if auto_c:
        block_c = dc
    assert block_b % 8 == 0 and block_c % 128 == 0

    pB = _round_up(B, block_b)
    # v7x megacore: if only one row tile, try to give the j axis >= 2 tiles.
    if auto_c and pB // block_b == 1 and block_c > 128 \
            and _round_up(C, block_c) // block_c == 1:
        block_c = _shrink(block_c, 128)
    pC = _round_up(C, block_c)
    grid = (pB // block_b, pC // block_c)

    # Pad inputs; MXU operands are cast once to bf16 (f32 epilogue in-kernel).
    x_p = jnp.pad(x.astype(mxu_dtype), ((0, pB - B), (0, 0)))
    w_p = jnp.pad(weight.astype(mxu_dtype), ((0, pC - C), (0, 0)))
    lab_p = jnp.pad(label.astype(jnp.int32).reshape(B, 1), ((0, pB - B), (0, 0)),
                    constant_values=-1)        # -1 never matches a class column

    # Inverse L2 norms precomputed once (tiny XLA reductions).  eps^2 clamp on
    # the sum of squares preserves max(||.||, eps) semantics of F.normalize;
    # padded (all-zero) rows stay harmless since their raw dot is exactly 0.
    eps2 = jnp.float32(1e-24)
    xf = x_p.astype(jnp.float32)
    wf = w_p.astype(jnp.float32)
    sx = float(s) * lax.rsqrt(
        jnp.maximum(jnp.sum(xf * xf, axis=-1, keepdims=True), eps2))       # (pB, 1)
    iw = lax.rsqrt(
        jnp.maximum(jnp.sum(wf * wf, axis=-1, keepdims=True), eps2)
    ).reshape(1, pC)                                                        # (1, pC)

    # Exact per-(row-tile, col-tile) flag: does any label in row tile i fall in
    # column tile j?  Padded labels (-1) map to tile -1 and never match.
    tile_of_label = lab_p.reshape(grid[0], block_b) // block_c
    flags = (tile_of_label[:, :, None] == jnp.arange(grid[1])[None, None, :]
             ).any(axis=1).astype(jnp.int32).reshape(-1)                    # (gB*gC,)

    cos_m = math.cos(m)
    sin_m = math.sin(m)
    th = math.cos(math.pi - m)
    mm = math.sin(math.pi - m) * m

    kernel = functools.partial(
        _arcface_kernel, s=float(s), inv_s=1.0 / float(s),
        cos_m=cos_m, sin_m=sin_m, th=th, mm=mm, block_c=block_c)

    cost = pl.CostEstimate(
        flops=2 * pB * pC * D,
        transcendentals=pB,                          # ~one sqrt per labeled row
        bytes_accessed=pB * D * itemsize             # x: read once per row tile
        + grid[0] * pC * D * itemsize                # W: streamed once per row tile
        + pB * 4 + pC * 4 + pB * 4                   # sx, iw, labels
        + pB * pC * jnp.dtype(out_dtype).itemsize,   # output
    )

    out = pl.pallas_call(
        kernel,
        out_shape=jax.ShapeDtypeStruct((pB, pC), out_dtype),
        grid_spec=pltpu.PrefetchScalarGridSpec(
            num_scalar_prefetch=1,
            grid=grid,
            in_specs=[
                pl.BlockSpec((block_b, D), lambda i, j, f: (i, 0)),   # x tile (resident over j)
                pl.BlockSpec((block_c, D), lambda i, j, f: (j, 0)),   # W tile (streams over j)
                pl.BlockSpec((block_b, 1), lambda i, j, f: (i, 0)),   # s / ||x_row||
                pl.BlockSpec((1, block_c), lambda i, j, f: (0, j)),   # 1 / ||w_row||
                pl.BlockSpec((block_b, 1), lambda i, j, f: (i, 0)),   # labels
            ],
            out_specs=pl.BlockSpec((block_b, block_c), lambda i, j, f: (i, j)),
        ),
        compiler_params=pltpu.CompilerParams(
            dimension_semantics=("parallel", "parallel"),
            vmem_limit_bytes=48 * 1024 * 1024,
        ),
        cost_estimate=cost,
    )(flags, x_p, w_p, sx, iw, lab_p)

    return out[:B, :C]


def init_arcface_weight(key, in_features, out_features):
    # nn.init.kaiming_uniform_(weight, a=sqrt(5)) on a (out, in) matrix
    # -> bound = 1 / sqrt(fan_in)
    bound = 1.0 / math.sqrt(in_features)
    return jax.random.uniform(
        key, (out_features, in_features), jnp.float32, minval=-bound, maxval=bound
    )


def _reference(x, label, weight, s=30.0, m=0.5, mxu_dtype=jnp.bfloat16):
    """Plain-JAX reference mirroring the kernel's bf16 MXU inputs."""
    eps = 1e-12
    xf = x.astype(mxu_dtype).astype(jnp.float32)
    wf = weight.astype(mxu_dtype).astype(jnp.float32)
    x_n = xf / jnp.maximum(jnp.linalg.norm(xf, axis=-1, keepdims=True), eps)
    w_n = wf / jnp.maximum(jnp.linalg.norm(wf, axis=-1, keepdims=True), eps)
    cosine = jnp.einsum("bd,cd->bc", x_n, w_n, precision=lax.Precision.HIGHEST)
    sine = jnp.sqrt(jnp.clip(1.0 - cosine**2, 0.0, 1.0))
    cos_m, sin_m = math.cos(m), math.sin(m)
    th = math.cos(math.pi - m)
    mm = math.sin(math.pi - m) * m
    phi = cosine * cos_m - sine * sin_m
    phi = jnp.where(cosine > th, phi, cosine - mm)
    one_hot = jax.nn.one_hot(label, cosine.shape[1], dtype=jnp.float32)
    return s * (one_hot * phi + (1.0 - one_hot) * cosine)


if __name__ == "__main__":
    # Small shapes that still exercise a 2x2 grid (B pads to 16, C pads to 256),
    # so both the "has-label" and "no-label" epilogue paths are taken.
    B, IN_F, OUT_F = 16, 64, 200

    key = jax.random.PRNGKey(0)
    kx, kw, kl = jax.random.split(key, 3)
    x = jax.random.normal(kx, (B, IN_F), jnp.float32)
    weight = init_arcface_weight(kw, IN_F, OUT_F)
    label = jax.random.randint(kl, (B,), 0, OUT_F, dtype=jnp.int32)

    fwd = jax.jit(functools.partial(arcface_forward, s=30.0, m=0.5,
                                    block_b=8, block_c=128))
    out = jax.block_until_ready(fwd(x, label, weight))

    ref = _reference(x, label, weight, s=30.0, m=0.5)
    assert out.shape == (B, OUT_F)
    assert jnp.allclose(out, ref, atol=2e-2, rtol=1e-2), float(
        jnp.max(jnp.abs(out - ref)))

    # Also exercise the auto-tile path (single row tile, auto block sizes).
    out2 = jax.block_until_ready(
        jax.jit(functools.partial(arcface_forward, s=30.0, m=0.5))(x, label, weight))
    assert jnp.allclose(out2, ref, atol=2e-2, rtol=1e-2), float(
        jnp.max(jnp.abs(out2 - ref)))

    print("KERNEL_OK")
</pallas_src>

<mosaic_0001>
module attributes {stable_mosaic.version = 11 : i64} {
  func.func @_arcface_kernel(%arg0: i32, %arg1: i32, %arg2: memref<4xi32, #tpu.memory_space<smem>>, %arg3: memref<8x64xbf16, #tpu.memory_space<vmem>>, %arg4: memref<128x64xbf16, #tpu.memory_space<vmem>>, %arg5: memref<8x1xf32, #tpu.memory_space<vmem>>, %arg6: memref<1x128xf32, #tpu.memory_space<vmem>>, %arg7: memref<8x1xi32, #tpu.memory_space<vmem>>, %arg8: memref<8x128xf32, #tpu.memory_space<vmem>>) attributes {dimension_semantics = [#tpu.dimension_semantics<parallel>, #tpu.dimension_semantics<parallel>], iteration_bounds = array<i64: 2, 2>, scalar_prefetch = 1 : i64, scratch_operands = 0 : i64, tpu.core_type = #tpu.core_type<tc>, window_params = [{transform_indices = @transform_0, window_bounds = array<i64: 8, 64>}, {transform_indices = @transform_1, window_bounds = array<i64: 128, 64>}, {transform_indices = @transform_2, window_bounds = array<i64: 8, 1>}, {transform_indices = @transform_3, window_bounds = array<i64: 1, 128>}, {transform_indices = @transform_4, window_bounds = array<i64: 8, 1>}, {transform_indices = @transform_5, window_bounds = array<i64: 8, 128>}]} {
    %c0 = arith.constant 0 : index
    %c0_0 = arith.constant 0 : index
    %0 = vector.load %arg3[%c0, %c0_0] : memref<8x64xbf16, #tpu.memory_space<vmem>>, vector<8x64xbf16>
    %c0_1 = arith.constant 0 : index
    %c0_2 = arith.constant 0 : index
    %1 = vector.load %arg4[%c0_1, %c0_2] : memref<128x64xbf16, #tpu.memory_space<vmem>>, vector<128x64xbf16>
    %cst = arith.constant dense<0.000000e+00> : vector<8x128xf32>
    %2 = tpu.matmul %0, %1, %cst {dimension_numbers = #tpu.dot_dimension_numbers<[1], [1], [0], [0], [0, 0, 1, 0], [], []>} : vector<8x64xbf16>, vector<128x64xbf16>, vector<8x128xf32> -> vector<8x128xf32>
    %c0_3 = arith.constant 0 : index
    %c0_4 = arith.constant 0 : index
    %3 = vector.load %arg5[%c0_3, %c0_4] : memref<8x1xf32, #tpu.memory_space<vmem>>, vector<8x1xf32>
    %4 = vector.broadcast %3 : vector<8x1xf32> to vector<8x128xf32>
    %5 = arith.mulf %2, %4 : vector<8x128xf32>
    %c0_5 = arith.constant 0 : index
    %c0_6 = arith.constant 0 : index
    %6 = vector.load %arg6[%c0_5, %c0_6] : memref<1x128xf32, #tpu.memory_space<vmem>>, vector<1x128xf32>
    %7 = vector.broadcast %6 : vector<1x128xf32> to vector<8x128xf32>
    %8 = arith.mulf %5, %7 : vector<8x128xf32>
    %c2_i32 = arith.constant 2 : i32
    %9 = arith.muli %arg0, %c2_i32 : i32
    %10 = arith.addi %9, %arg1 : i32
    %11 = arith.index_cast %10 : i32 to index
    %12 = memref.load %arg2[%11] : memref<4xi32, #tpu.memory_space<smem>>
    %c0_i32 = arith.constant 0 : i32
    %13 = arith.cmpi sgt, %12, %c0_i32 : i32
    %14 = arith.extui %13 : i1 to i32
    %c0_i32_7 = arith.constant 0 : i32
    %15 = arith.cmpi ne, %14, %c0_i32_7 : i32
    scf.if %15 {
      %19 = tpu.iota {dimensions = array<i32: 1>} : vector<8x128xi32>
      %c0_9 = arith.constant 0 : index
      %c0_10 = arith.constant 0 : index
      %20 = vector.load %arg7[%c0_9, %c0_10] : memref<8x1xi32, #tpu.memory_space<vmem>>, vector<8x1xi32>
      %c128_i32 = arith.constant 128 : i32
      %21 = arith.muli %arg1, %c128_i32 : i32
      %22 = vector.broadcast %21 : i32 to vector<8x1xi32>
      %23 = arith.subi %20, %22 : vector<8x1xi32>
      %24 = vector.broadcast %23 : vector<8x1xi32> to vector<8x128xi32>
      %25 = arith.cmpi eq, %19, %24 : vector<8x128xi32>
      %cst_11 = arith.constant 0.000000e+00 : f32
      %26 = vector.broadcast %cst_11 : f32 to vector<8x128xf32>
      %27 = arith.select %25, %8, %26 : vector<8x128xi1>, vector<8x128xf32>
      %cst_12 = arith.constant dense<0.000000e+00> : vector<8xf32>
      %28 = vector.multi_reduction <add>, %27, %cst_12 [1] : vector<8x128xf32> to vector<8xf32>
      %29 = vector.shape_cast %28 : vector<8xf32> to vector<8x1xf32>
      %cst_13 = arith.constant 0.0333333351 : f32
      %30 = vector.broadcast %cst_13 : f32 to vector<8x1xf32>
      %31 = arith.mulf %29, %30 : vector<8x1xf32>
      %32 = arith.mulf %31, %31 : vector<8x1xf32>
      %cst_14 = arith.constant 1.000000e+00 : f32
      %33 = vector.broadcast %cst_14 : f32 to vector<8x1xf32>
      %34 = arith.subf %33, %32 : vector<8x1xf32>
      %cst_15 = arith.constant 0.000000e+00 : f32
      %cst_16 = arith.constant 1.000000e+00 : f32
      %35 = vector.broadcast %cst_15 : f32 to vector<8x1xf32>
      %36 = arith.maximumf %35, %34 : vector<8x1xf32>
      %37 = vector.broadcast %cst_16 : f32 to vector<8x1xf32>
      %38 = arith.minimumf %37, %36 : vector<8x1xf32>
      %39 = math.sqrt %38 : vector<8x1xf32>
      %cst_17 = arith.constant 0.87758255 : f32
      %40 = vector.broadcast %cst_17 : f32 to vector<8x1xf32>
      %41 = arith.mulf %31, %40 : vector<8x1xf32>
      %cst_18 = arith.constant 0.47942555 : f32
      %42 = vector.broadcast %cst_18 : f32 to vector<8x1xf32>
      %43 = arith.mulf %39, %42 : vector<8x1xf32>
      %44 = arith.subf %41, %43 : vector<8x1xf32>
      %cst_19 = arith.constant -0.87758255 : f32
      %45 = vector.broadcast %cst_19 : f32 to vector<8x1xf32>
      %46 = arith.cmpf ogt, %31, %45 : vector<8x1xf32>
      %cst_20 = arith.constant 0.239712775 : f32
      %47 = vector.broadcast %cst_20 : f32 to vector<8x1xf32>
      %48 = arith.subf %31, %47 : vector<8x1xf32>
      %49 = arith.select %46, %44, %48 : vector<8x1xi1>, vector<8x1xf32>
      %cst_21 = arith.constant 3.000000e+01 : f32
      %50 = vector.broadcast %cst_21 : f32 to vector<8x1xf32>
      %51 = arith.mulf %50, %49 : vector<8x1xf32>
      %52 = arith.subf %51, %29 : vector<8x1xf32>
      %cst_22 = arith.constant 0.000000e+00 : f32
      %53 = vector.shape_cast %52 : vector<8x1xf32> to vector<8x1xf32>
      %54 = vector.broadcast %53 : vector<8x1xf32> to vector<8x128xf32>
      %55 = vector.broadcast %cst_22 : f32 to vector<8x128xf32>
      %56 = arith.select %25, %54, %55 : vector<8x128xi1>, vector<8x128xf32>
      %57 = arith.addf %8, %56 : vector<8x128xf32>
      %c0_23 = arith.constant 0 : index
      %c0_24 = arith.constant 0 : index
      %58 = vector.load %arg8[%c0_23, %c0_24] : memref<8x128xf32, #tpu.memory_space<vmem>>, vector<8x128xf32>
      tpu.vector_store %arg8[%c0_23, %c0_24], %57 {strides = array<i32>} : memref<8x128xf32, #tpu.memory_space<vmem>>, vector<8x128xf32>,
    } else {
    }
    %true = arith.constant true
    %16 = arith.xori %13, %true : i1
    %17 = arith.extui %16 : i1 to i32
    %c0_i32_8 = arith.constant 0 : i32
    %18 = arith.cmpi ne, %17, %c0_i32_8 : i32
    scf.if %18 {
      %c0_9 = arith.constant 0 : index
      %c0_10 = arith.constant 0 : index
      %19 = vector.load %arg8[%c0_9, %c0_10] : memref<8x128xf32, #tpu.memory_space<vmem>>, vector<8x128xf32>
      tpu.vector_store %arg8[%c0_9, %c0_10], %8 {strides = array<i32>} : memref<8x128xf32, #tpu.memory_space<vmem>>, vector<8x128xf32>,
    } else {
    }
    return
  }
  func.func @transform_0(%arg0: i32, %arg1: i32, %arg2: memref<4xi32, #tpu.memory_space<smem>>) -> (i32, i32) {
    %c0_i32 = arith.constant 0 : i32
    %c0_i32_0 = arith.constant 0 : i32
    return %arg0, %c0_i32 : i32, i32
  }
  func.func @transform_1(%arg0: i32, %arg1: i32, %arg2: memref<4xi32, #tpu.memory_space<smem>>) -> (i32, i32) {
    %c0_i32 = arith.constant 0 : i32
    %c0_i32_0 = arith.constant 0 : i32
    return %arg1, %c0_i32 : i32, i32
  }
  func.func @transform_2(%arg0: i32, %arg1: i32, %arg2: memref<4xi32, #tpu.memory_space<smem>>) -> (i32, i32) {
    %c0_i32 = arith.constant 0 : i32
    %c0_i32_0 = arith.constant 0 : i32
    return %arg0, %c0_i32 : i32, i32
  }
  func.func @transform_3(%arg0: i32, %arg1: i32, %arg2: memref<4xi32, #tpu.memory_space<smem>>) -> (i32, i32) {
    %c0_i32 = arith.constant 0 : i32
    %c0_i32_0 = arith.constant 0 : i32
    return %c0_i32, %arg1 : i32, i32
  }
  func.func @transform_4(%arg0: i32, %arg1: i32, %arg2: memref<4xi32, #tpu.memory_space<smem>>) -> (i32, i32) {
    %c0_i32 = arith.constant 0 : i32
    %c0_i32_0 = arith.constant 0 : i32
    return %arg0, %c0_i32 : i32, i32
  }
  func.func @transform_5(%arg0: i32, %arg1: i32, %arg2: memref<4xi32, #tpu.memory_space<smem>>) -> (i32, i32) {
    %c0_i32 = arith.constant 0 : i32
    return %arg0, %arg1 : i32, i32
  }
}

</mosaic_0001>

<llo_original>
// kernel: arcface_forward.1
$region0: #{arcface_forward.1}
  #allocation0 [shape = 'u32[]', space=smem, size = 0x4, offset = 0x4, fixed_abs, tag = 'smem constant byte address 0x4 - core index']
  #allocation1 [shape = 'u32[144,128]{1,0:T(1,128)}', space=vmem, size = 0x12000, scoped, tag = 'internal scratch']
  #allocation2 [shape = 's32[1]{0}', space=sflag, size = 0x4, scoped, tag = 'scoped memory for arcface_forward.1']
  #allocation3 [shape = 'u8[512]{0}', space=smem, size = 0x200, scoped, tag = 'prefetched SMEM operand 0']
  %s0 = inlined_call_operand.vmem [shape: s32[4], index: 0, kind: input, shape index: {}]
  %s1 = inlined_call_operand.vmem [shape: bf16[16,64], index: 1, kind: input, shape index: {}]
  %s2 = inlined_call_operand.vmem [shape: bf16[256,64], index: 2, kind: input, shape index: {}]
  %s3 = inlined_call_operand.vmem [shape: f32[16,1], index: 3, kind: input, shape index: {}]
  %s4 = inlined_call_operand.vmem [shape: f32[1,256], index: 4, kind: input, shape index: {}]
  %s5 = inlined_call_operand.vmem [shape: s32[16,1], index: 5, kind: input, shape index: {}]
  %s6 = inlined_call_operand.hbm [shape: f32[16,256], index: 6, kind: output, shape index: {}]
  %s7 = sld [smem:[#allocation0]]
  $region61: #{arcface_forward.1} parent=0
    _
  %s9 = ssub.s32 1, %s7
  %s10 = scalar_select 0, %s9, %s7
  %s11 = sshll.u32 %s0, 4
  %s12 = int_to_ptr.vmem [resolvable:$true] %s11
  %14 = dma.vmem_to_smem %s12, 16, [#allocation3], [#allocation2]
  %15 = dma.done [#allocation2], 16
  %16 = sfence
  $region1: #{arcface_forward.1} parent=0
    #allocation4 [shape = 'u8[8192]{0}', space=vmem, size = 0x2000, scoped, tag = 'output window, operand 0']
    #allocation5 [shape = 's32[2]{0}', space=sflag, size = 0x8, scoped, tag = 'scoped memory for arcface_forward.1']
    %17 = vsyncpa [#allocation5], 0
    %s18 = scalar_lea.sflag [#allocation5], 1
    %19 = vsyncpa %s18, 0
    loop: start=0, step=1, limit=6
    $region2: #{arcface_forward.1} parent=1 // loop_pre_header
      _
    $region3: #{arcface_forward.1} parent=1 // loop_header
      %s21 = sphi 0, %s25
      %p22 = scmp.ge.s32.totalorder %s21, 6
      %s28 = sphi 0, %s40
      %s29 = sphi 0, %s36
      %s30 = sphi 0, %s28
      %s31 = sphi 0, %s29
      %s32 = sphi 0, %s30
      %s33 = sphi 0, %s31
      %s43 = sphi 0, %s45
      %s46 = sphi 0, %s43
      %s47 = sphi 0, %s46
      %s63 = sphi 0, %s47
      %s69 = sphi 0, %s71
      %s72 = sphi 0, %s69
      %s73 = sphi 0, %s72
      %s89 = sphi 0, %s73
      %s95 = sphi 0, %s97
      %s98 = sphi 0, %s95
      %s99 = sphi 0, %s98
      %s115 = sphi 0, %s99
      %s121 = sphi 0, %s123
      %s124 = sphi 0, %s121
      %s125 = sphi 0, %s124
      %s141 = sphi 0, %s125
      %s147 = sphi 0, %s149
      %s150 = sphi 0, %s147
      %s151 = sphi 0, %s150
      %s167 = sphi 0, %s151
      %s175 = sphi 0, %s177
      %s178 = sphi 0, %s175
      %s179 = sphi 0, %s178
      %s195 = sphi 0, %s179
    $region4: #{arcface_forward.1} parent=1 // loop_header_branch
      %24 = sbr.rel (%p22) target = $region8
    $region5: #{arcface_forward.1} parent=1 // loop_body
      %s26 = ssub.s32 %s21, 1
      %s27 = ssub.s32 %s21, 2
      %s34 = sadd.s32 1, %s29
      %p35 = scmp.ge.s32.totalorder %s34, 2
      %s36 = scalar_select %p35, 0, %s34
      %s37 = sadd.s32 1, %s28
      %s38 = scalar_select %p35, %s37, %s28
      %p39 = scmp.ge.s32.totalorder %s38, 2
      %s40 = scalar_select %p39, 0, %s38
      %s41 = ssub.s32 %s28, %s40
      %p42 = scmp.eq.s32.totalorder %s41, 0
      %s44 = sadd.s32 %s43, 1
      %s45 = scalar_select %p42, %s43, %s44
      %p48 = pneg %p42
      %p49 = scmp.eq.s32.totalorder %s21, 3
      %p50 = por %p48, %p49
      %p51 = scmp.ne.s32.totalorder %s43, %s46
      %p52 = scmp.eq.s32.totalorder %s21, 0
      %p53 = por %p51, %p52
      %p54 = scmp.ne.s32.totalorder %s43, %s46
      %p55 = scmp.eq.s32.totalorder %s26, 3
      %p56 = por %p54, %p55
      %p57 = scmp.ne.s32.totalorder %s46, %s47
      %p58 = scmp.eq.s32.totalorder %s26, 0
      %p59 = por %p57, %p58
      %p60 = scmp.ne.s32.totalorder %s46, %s47
      %p61 = scmp.eq.s32.totalorder %s27, 3
      %p62 = por %p60, %p61
      %p64 = scmp.ne.s32.totalorder %s47, %s63
      %p65 = scmp.eq.s32.totalorder %s27, 0
      %p66 = por %p64, %p65
      %s67 = ssub.s32 %s29, %s36
      %p68 = scmp.eq.s32.totalorder %s67, 0
      %s70 = sadd.s32 %s69, 1
      %s71 = scalar_select %p68, %s69, %s70
      %p74 = pneg %p68
      %p75 = scmp.eq.s32.totalorder %s21, 3
      %p76 = por %p74, %p75
      %p77 = scmp.ne.s32.totalorder %s69, %s72
      %p78 = scmp.eq.s32.totalorder %s21, 0
      %p79 = por %p77, %p78
      %p80 = scmp.ne.s32.totalorder %s69, %s72
      %p81 = scmp.eq.s32.totalorder %s26, 3
      %p82 = por %p80, %p81
      %p83 = scmp.ne.s32.totalorder %s72, %s73
      %p84 = scmp.eq.s32.totalorder %s26, 0
      %p85 = por %p83, %p84
      %p86 = scmp.ne.s32.totalorder %s72, %s73
      %p87 = scmp.eq.s32.totalorder %s27, 3
      %p88 = por %p86, %p87
      %p90 = scmp.ne.s32.totalorder %s73, %s89
      %p91 = scmp.eq.s32.totalorder %s27, 0
      %p92 = por %p90, %p91
      %s93 = ssub.s32 %s28, %s40
      %p94 = scmp.eq.s32.totalorder %s93, 0
      %s96 = sadd.s32 %s95, 1
      %s97 = scalar_select %p94, %s95, %s96
      %p100 = pneg %p94
      %p101 = scmp.eq.s32.totalorder %s21, 3
      %p102 = por %p100, %p101
      %p103 = scmp.ne.s32.totalorder %s95, %s98
      %p104 = scmp.eq.s32.totalorder %s21, 0
      %p105 = por %p103, %p104
      %p106 = scmp.ne.s32.totalorder %s95, %s98
      %p107 = scmp.eq.s32.totalorder %s26, 3
      %p108 = por %p106, %p107
      %p109 = scmp.ne.s32.totalorder %s98, %s99
      %p110 = scmp.eq.s32.totalorder %s26, 0
      %p111 = por %p109, %p110
      %p112 = scmp.ne.s32.totalorder %s98, %s99
      %p113 = scmp.eq.s32.totalorder %s27, 3
      %p114 = por %p112, %p113
      %p116 = scmp.ne.s32.totalorder %s99, %s115
      %p117 = scmp.eq.s32.totalorder %s27, 0
      %p118 = por %p116, %p117
      %s119 = ssub.s32 %s29, %s36
      %p120 = scmp.eq.s32.totalorder %s119, 0
      %s122 = sadd.s32 %s121, 1
      %s123 = scalar_select %p120, %s121, %s122
      %p126 = pneg %p120
      %p127 = scmp.eq.s32.totalorder %s21, 3
      %p128 = por %p126, %p127
      %p129 = scmp.ne.s32.totalorder %s121, %s124
      %p130 = scmp.eq.s32.totalorder %s21, 0
      %p131 = por %p129, %p130
      %p132 = scmp.ne.s32.totalorder %s121, %s124
      %p133 = scmp.eq.s32.totalorder %s26, 3
      %p134 = por %p132, %p133
      %p135 = scmp.ne.s32.totalorder %s124, %s125
      %p136 = scmp.eq.s32.totalorder %s26, 0
      %p137 = por %p135, %p136
      %p138 = scmp.ne.s32.totalorder %s124, %s125
      %p139 = scmp.eq.s32.totalorder %s27, 3
      %p140 = por %p138, %p139
      %p142 = scmp.ne.s32.totalorder %s125, %s141
      %p143 = scmp.eq.s32.totalorder %s27, 0
      %p144 = por %p142, %p143
      %s145 = ssub.s32 %s28, %s40
      %p146 = scmp.eq.s32.totalorder %s145, 0
      %s148 = sadd.s32 %s147, 1
      %s149 = scalar_select %p146, %s147, %s148
      %p152 = pneg %p146
      %p153 = scmp.eq.s32.totalorder %s21, 3
      %p154 = por %p152, %p153
      %p155 = scmp.ne.s32.totalorder %s147, %s150
      %p156 = scmp.eq.s32.totalorder %s21, 0
      %p157 = por %p155, %p156
      %p158 = scmp.ne.s32.totalorder %s147, %s150
      %p159 = scmp.eq.s32.totalorder %s26, 3
      %p160 = por %p158, %p159
      %p161 = scmp.ne.s32.totalorder %s150, %s151
      %p162 = scmp.eq.s32.totalorder %s26, 0
      %p163 = por %p161, %p162
      %p164 = scmp.ne.s32.totalorder %s150, %s151
      %p165 = scmp.eq.s32.totalorder %s27, 3
      %p166 = por %p164, %p165
      %p168 = scmp.ne.s32.totalorder %s151, %s167
      %p169 = scmp.eq.s32.totalorder %s27, 0
      %p170 = por %p168, %p169
      %s171 = ssub.s32 %s28, %s40
      %s172 = ssub.s32 %s29, %s36
      %s173 = sor.u32 %s171, %s172
      %p174 = scmp.eq.s32.totalorder %s173, 0
      %s176 = sadd.s32 %s175, 1
      %s177 = scalar_select %p174, %s175, %s176
      %p180 = pneg %p174
      %p181 = scmp.eq.s32.totalorder %s21, 3
      %p182 = por %p180, %p181
      %p183 = scmp.ne.s32.totalorder %s175, %s178
      %p184 = scmp.eq.s32.totalorder %s21, 0
      %p185 = por %p183, %p184
      %p186 = scmp.ne.s32.totalorder %s175, %s178
      %p187 = scmp.eq.s32.totalorder %s26, 3
      %p188 = por %p186, %p187
      %p189 = scmp.ne.s32.totalorder %s178, %s179
      %p190 = scmp.eq.s32.totalorder %s26, 0
      %p191 = por %p189, %p190
      %p192 = scmp.ne.s32.totalorder %s178, %s179
      %p193 = scmp.eq.s32.totalorder %s27, 3
      %p194 = por %p192, %p193
      %p196 = scmp.ne.s32.totalorder %s179, %s195
      %p197 = scmp.eq.s32.totalorder %s27, 0
      %p198 = por %p196, %p197
      %p199 = scmp.le.s32.totalorder 1, %s21
      %p200 = scmp.lt.s32.totalorder %s21, 5
      %p201 = pnand %p199, %p200
      %p202 = pneg %p201
      // Predicated region
      $region9: #{arcface_forward.1} parent=5 // pred_check
        _
      $region10: #{arcface_forward.1} parent=5 // pred_check_branch
        %204 = sbr.rel (%p201) target = $region12
      $region11: #{arcface_forward.1} parent=5 // pred_region
        %s205 = ssub.s32 %s21, 1
      $region12: #{arcface_forward.1} parent=5 // pred_fallthru
        _
      %p206 = scmp.lt.s32.totalorder %s21, 4
      // Predicated region
      $region13: #{arcface_forward.1} parent=5 // pred_check
        %p207 = pneg %p206
      $region14: #{arcface_forward.1} parent=5 // pred_check_branch
        %209 = sbr.rel (%p207) target = $region16
      $region15: #{arcface_forward.1} parent=5 // pred_region
        // Predicated region
        $region17: #{arcface_forward.1} parent=15 // pred_check
          %p210 = pneg %p53
        $region18: #{arcface_forward.1} parent=15 // pred_check_branch
          %212 = sbr.rel (%p210) target = $region20
        $region19: #{arcface_forward.1} parent=15 // pred_region
          %p213 = scmp.lt.s32.totalorder %s28, 1
          %s214 = scalar_select %p213, %s28, 1
          %s215 = smul.addr %s214, 4
          %s216 = scalar_lea.vmem %s1, %s215
        $region20: #{arcface_forward.1} parent=15 // pred_fallthru
          _
        // Predicated region
        $region21: #{arcface_forward.1} parent=15 // pred_check
          %p217 = pneg %p79
        $region22: #{arcface_forward.1} parent=15 // pred_check_branch
          %219 = sbr.rel (%p217) target = $region24
        $region23: #{arcface_forward.1} parent=15 // pred_region
          %s220 = smul.u32 16, %s29
          %p221 = scmp.lt.s32.totalorder %s220, 31
          %s222 = scalar_select %p221, %s220, 31
          %s223 = smul.addr %s222, 4
          %s224 = scalar_lea.vmem %s2, %s223
          %s225 = smul.u32 16, %s29
        $region24: #{arcface_forward.1} parent=15 // pred_fallthru
          _
        // Predicated region
        $region25: #{arcface_forward.1} parent=15 // pred_check
          %p226 = pneg %p105
        $region26: #{arcface_forward.1} parent=15 // pred_check_branch
          %228 = sbr.rel (%p226) target = $region28
        $region27: #{arcface_forward.1} parent=15 // pred_region
          %p229 = scmp.lt.s32.totalorder %s28, 1
          %s230 = scalar_select %p229, %s28, 1
          %s231 = smul.addr %s230, 8
          %s232 = scalar_lea.vmem %s3, %s231
        $region28: #{arcface_forward.1} parent=15 // pred_fallthru
          _
        // Predicated region
        $region29: #{arcface_forward.1} parent=15 // pred_check
          %p233 = pneg %p131
        $region30: #{arcface_forward.1} parent=15 // pred_check_branch
          %235 = sbr.rel (%p233) target = $region32
        $region31: #{arcface_forward.1} parent=15 // pred_region
          %p236 = scmp.lt.s32.totalorder %s29, 1
          %s237 = scalar_select %p236, %s29, 1
          %s238 = scalar_lea.vmem %s4, %s237
        $region32: #{arcface_forward.1} parent=15 // pred_fallthru
          _
        // Predicated region
        $region33: #{arcface_forward.1} parent=15 // pred_check
          %p239 = pneg %p157
        $region34: #{arcface_forward.1} parent=15 // pred_check_branch
          %241 = sbr.rel (%p239) target = $region36
        $region35: #{arcface_forward.1} parent=15 // pred_region
          %p242 = scmp.lt.s32.totalorder %s28, 1
          %s243 = scalar_select %p242, %s28, 1
          %s244 = smul.addr %s243, 8
          %s245 = scalar_lea.vmem %s5, %s244
        $region36: #{arcface_forward.1} parent=15 // pred_fallthru
          _
      $region16: #{arcface_forward.1} parent=5 // pred_fallthru
        _
      %p246 = scmp.le.s32.totalorder 1, %s21
      %p247 = scmp.lt.s32.totalorder %s21, 5
      %p248 = pnand %p246, %p247
      %p249 = pneg %p248
      // Predicated region
      $region37: #{arcface_forward.1} parent=5 // pred_check
        _
      $region38: #{arcface_forward.1} parent=5 // pred_check_branch
        %251 = sbr.rel (%p248) target = $region40
      $region39: #{arcface_forward.1} parent=5 // pred_region
        %s252 = ssub.s32 %s21, 1
        %p253 = scmp.lt.s32.totalorder %s30, 1
        %s254 = scalar_select %p253, %s30, 1
        %s255 = smul.addr %s254, 4
        %s256 = scalar_lea.vmem %s1, %s255
        %p257 = pneg %p59
        %p258 = pneg %p56
        %s259 = smul.u32 16, %s31
        %p260 = scmp.lt.s32.totalorder %s259, 31
        %s261 = scalar_select %p260, %s259, 31
        %s262 = smul.addr %s261, 4
        %s263 = scalar_lea.vmem %s2, %s262
        %p264 = pneg %p85
        %p265 = pneg %p82
        %p266 = scmp.lt.s32.totalorder %s30, 1
        %s267 = scalar_select %p266, %s30, 1
        %s268 = smul.addr %s267, 8
        %s269 = scalar_lea.vmem %s3, %s268
        %p270 = pneg %p111
        %p271 = pneg %p108
        %p272 = scmp.lt.s32.totalorder %s31, 1
        %s273 = scalar_select %p272, %s31, 1
        %s274 = scalar_lea.vmem %s4, %s273
        %p275 = pneg %p137
        %p276 = pneg %p134
        %p277 = scmp.lt.s32.totalorder %s30, 1
        %s278 = scalar_select %p277, %s30, 1
        %s279 = smul.addr %s278, 8
        %s280 = scalar_lea.vmem %s5, %s279
        %p281 = pneg %p163
        %p282 = pneg %p160
        %p283 = pneg %p191
        %p284 = pneg %p188
        %s285 = sand.u32 %s178, 1
        %s286 = scalar_lea.sflag [#allocation5], %s285
        %s287 = sand.u32 %s178, 1
        %s288 = smul.addr %s287, 8
        %s289 = scalar_lea.vmem [#allocation4], %s288
        %p290 = scmp.lt.s32.totalorder %s30, 1
        %s291 = scalar_select %p290, %s30, 1
        %s292 = smul.addr %s291, 4
        %s293 = scalar_lea.vmem %s1, %s292
        %s294 = smul.u32 16, %s31
        %p295 = scmp.lt.s32.totalorder %s294, 31
        %s296 = scalar_select %p295, %s294, 31
        %s297 = smul.addr %s296, 4
        %s298 = scalar_lea.vmem %s2, %s297
        %s299 = smul.u32 16, %s31
        %p300 = scmp.lt.s32.totalorder %s30, 1
        %s301 = scalar_select %p300, %s30, 1
        %s302 = smul.addr %s301, 8
        %s303 = scalar_lea.vmem %s3, %s302
        %p304 = scmp.lt.s32.totalorder %s31, 1
        %s305 = scalar_select %p304, %s31, 1
        %s306 = scalar_lea.vmem %s4, %s305
        %p307 = scmp.lt.s32.totalorder %s30, 1
        %s308 = scalar_select %p307, %s30, 1
        %s309 = smul.addr %s308, 8
        %s310 = scalar_lea.vmem %s5, %s309
        %v312 = vld [vmem:[%s293] sm:$0xf]
        %v313 = vld [vmem:[%s298] sm:$0xf]
        %v314 = vld [vmem:[%s298 + $0x4] sm:$0xf]
        %v315 = vld [vmem:[%s298 + $0x8] sm:$0xf]
        %v316 = vld [vmem:[%s298 + $0xc] sm:$0xf]
        %v317 = vld [vmem:[%s298 + $0x10] sm:$0xf]
        %v318 = vld [vmem:[%s298 + $0x14] sm:$0xf]
        %v319 = vld [vmem:[%s298 + $0x18] sm:$0xf]
        %v320 = vld [vmem:[%s298 + $0x1c] sm:$0xf]
        %v321 = vld [vmem:[%s298 + $0x20] sm:$0xf]
        %v322 = vld [vmem:[%s298 + $0x24] sm:$0xf]
        %v323 = vld [vmem:[%s298 + $0x28] sm:$0xf]
        %v324 = vld [vmem:[%s298 + $0x2c] sm:$0xf]
        %v325 = vld [vmem:[%s298 + $0x30] sm:$0xf]
        %v326 = vld [vmem:[%s298 + $0x34] sm:$0xf]
        %v327 = vld [vmem:[%s298 + $0x38] sm:$0xf]
        %v328 = vld [vmem:[%s298 + $0x3c] sm:$0xf]
        %v345 = vunpack.c.l.b16 %v313
        %v346 = vunpack.c.l.b16 %v314
        %v347 = vunpack.c.l.b16 %v315
        %v348 = vunpack.c.l.b16 %v316
        %v349 = vunpack.c.l.b16 %v317
        %v350 = vunpack.c.l.b16 %v318
        %v351 = vunpack.c.l.b16 %v319
        %v352 = vunpack.c.l.b16 %v320
        %v353 = vunpack.c.l.b16 %v321
        %v354 = vunpack.c.l.b16 %v322
        %v355 = vunpack.c.l.b16 %v323
        %v356 = vunpack.c.l.b16 %v324
        %v357 = vunpack.c.l.b16 %v325
        %v358 = vunpack.c.l.b16 %v326
        %v359 = vunpack.c.l.b16 %v327
        %v360 = vunpack.c.l.b16 %v328
        %v361 = vpack.c.b16 %v346, %v345
        %v362 = vpack.c.b16 %v348, %v347
        %v363 = vpack.c.b16 %v350, %v349
        %v364 = vpack.c.b16 %v352, %v351
        %v365 = vpack.c.b16 %v354, %v353
        %v366 = vpack.c.b16 %v356, %v355
        %v367 = vpack.c.b16 %v358, %v357
        %v368 = vpack.c.b16 %v360, %v359
        %vm369 = vcmask 523264
        %v371 = vsel %vm369, %v312, 0
        %v374 = vsel %vm369, %v361, 0
        %v377 = vsel %vm369, %v362, 0
        %v380 = vsel %vm369, %v363, 0
        %v383 = vsel %vm369, %v364, 0
        %v386 = vsel %vm369, %v365, 0
        %v389 = vsel %vm369, %v366, 0
        %v392 = vsel %vm369, %v367, 0
        %v395 = vsel %vm369, %v368, 0
        %397 = vmatprep.subr.bf16.mxu0 0
        %398 = vmatpush1.bf16.xpose.msra.mxu0 %v374
        %399 = vmatprep.subr.bf16.mxu0 0
        %400 = vmatpush1.bf16.xpose.msra.mxu0 %v377
        %401 = vmatprep.subr.bf16.mxu0 0
        %402 = vmatpush1.bf16.xpose.msra.mxu0 %v380
        %403 = vmatprep.subr.bf16.mxu0 0
        %404 = vmatpush1.bf16.xpose.msra.mxu0 %v383
        %405 = vmatprep.subr.bf16.mxu0 0
        %406 = vmatpush1.bf16.xpose.msra.mxu0 %v386
        %407 = vmatprep.subr.bf16.mxu0 0
        %408 = vmatpush1.bf16.xpose.msra.mxu0 %v389
        %409 = vmatprep.subr.bf16.mxu0 0
        %410 = vmatpush1.bf16.xpose.msra.mxu0 %v392
        %411 = vmatprep.subr.bf16.mxu0 0
        %412 = vmatpush1.bf16.xpose.msra.mxu0 %v395
        %413 = vmatprep.subr.bf16.mxu0 0
        %414 = vmatpush1.bf16.xpose.msra.mxu0 0
        %415 = vmatprep.subr.bf16.mxu0 0
        %416 = vmatpush1.bf16.xpose.msra.mxu0 0
        %417 = vmatprep.subr.bf16.mxu0 0
        %418 = vmatpush1.bf16.xpose.msra.mxu0 0
        %419 = vmatprep.subr.bf16.mxu0 0
        %420 = vmatpush1.bf16.xpose.msra.mxu0 0
        %421 = vmatprep.subr.bf16.mxu0 0
        %422 = vmatpush1.bf16.xpose.msra.mxu0 0
        %423 = vmatprep.subr.bf16.mxu0 0
        %424 = vmatpush1.bf16.xpose.msra.mxu0 0
        %425 = vmatprep.subr.bf16.mxu0 0
        %426 = vmatpush1.bf16.xpose.msra.mxu0 0
        %427 = vmatprep.subr.bf16.mxu0 0
        %428 = vmatpush1.bf16.xpose.msra.mxu0 0
        %429 = vmatprep.mubr.bf16.mxu0 0
        %430 = vmatmul.mubr.bf16.gmra.mrb[0].mxu0 %v371
        %v431 = vpop.f32.mrb[0].mxu0
        %v432 = vadd.f32 0.0, %v431
        %v433 = vpop.f32.mrb[0].mxu0
        %v434 = vpop.f32.mrb[0].mxu0
        %v435 = vpop.f32.mrb[0].mxu0
        %436 = vdwg.mxu0
        %v437 = vld [vmem:[%s303] sm:$0xff]
        %439 = vset.pattern.permute.xlu0 0
        %440 = vperm.xlu0 %439, %v437
        %v441 = vpop.permute.xlu0 %440
        %v443 = vmul.f32 %v432, %v441
        %v444 = vld [vmem:[%s306] sm:$0x1]
        %v446 = vlaneseq
        %v447 = vshrl.u32 %v446, 7
        %v448 = vsub.s32 0, %v447
        %v449 = vrot.slane %v444, %v448
        %v451 = vmul.f32 %v443, %v449
        %s452 = smul.u32 %s30, 2
        %s453 = sadd.s32 %s452, %s31
        %s454 = sld [smem:[#allocation3 + %s453]]
        %p455 = scmp.gt.s32.totalorder %s454, 0
        // Predicated region
        $region41: #{arcface_forward.1} parent=39 // pred_check
          %p456 = pneg %p455
        $region42: #{arcface_forward.1} parent=39 // pred_check_branch
          %458 = sbr.rel (%p456) target = $region44
        $region43: #{arcface_forward.1} parent=39 // pred_region
          %v459 = vlaneseq
          %v460 = vand.u32 %v459, 127
          %v461 = vld [vmem:[%s310] sm:$0xff]
          %s462 = smul.u32 %s31, 128
          %v463 = vstv %s462
          %v464 = vsub.s32 %v461, %v463
          %465 = vset.pattern.permute.xlu0 0
          %466 = vperm.xlu0 %465, %v464
          %v467 = vpop.permute.xlu0 %466
          %vm468 = vcmp.eq.s32.totalorder %v460, %v467
          %v469 = vsel %vm468, %v451, 0.0
          %470 = vadd.xlane.f32.xlu0 %v469
          %v471 = vpop.xlane.xlu0 %470
          %v472 = vmul.f32 %v471, 0.033333335
          %v473 = vmul.f32 %v472, %v472
          %v474 = vsub.f32 1.0, %v473
          %v475 = vmax.f32 %v474, 0.0
          %v476 = vmin.f32 %v475, 1.0
          %v477 = vrsqrt.pop %v476
          %v478 = vmul.f32 %v476, %v477
          %vm479 = vcmp.eq.f32.partialorder %v476, inf
          %v480 = vsel %vm479, %v476, %v478
          %vm481 = vcmp.eq.f32.partialorder %v476, 0.0
          %v482 = vand.u32 %v476, 2147483648
          %v483 = vsel %vm481, %v482, %v480
          %v484 = vmul.f32 %v472, 0.87758255
          %v485 = vmul.f32 %v483, 0.47942555
          %v486 = vsub.f32 %v484, %v485
          %vm487 = vcmp.gt.f32.partialorder %v472, -0.87758255
          %v488 = vsub.f32 %v472, 0.23971277
          %v489 = vsel %vm487, %v486, %v488
          %v490 = vmul.f32 %v489, 30.0
          %v491 = vsub.f32 %v490, %v471
          %v492 = vsel %vm468, %v491, 0.0
          %v493 = vadd.f32 %v451, %v492
          %494 = vst [vmem:[%s289] sm:$0xff] %v493
        $region44: #{arcface_forward.1} parent=39 // pred_fallthru
          _
        %p495 = scmp.le.s32.totalorder %s454, 0
        // Predicated region
        $region45: #{arcface_forward.1} parent=39 // pred_check
          %p496 = pneg %p495
        $region46: #{arcface_forward.1} parent=39 // pred_check_branch
          %498 = sbr.rel (%p496) target = $region48
        $region47: #{arcface_forward.1} parent=39 // pred_region
          %499 = vst [vmem:[%s289] sm:$0xff] %v451
        $region48: #{arcface_forward.1} parent=39 // pred_fallthru
          _
        %s500 = sand.u32 %s178, 1
        %s501 = scalar_lea.sflag [#allocation5], %s500
        %s502 = sand.u32 %s178, 1
        %s503 = smul.addr %s502, 8
        %s504 = scalar_lea.vmem [#allocation4], %s503
        // Predicated region
        $region49: #{arcface_forward.1} parent=39 // pred_check
          %p505 = pneg %p188
        $region50: #{arcface_forward.1} parent=39 // pred_check_branch
          %507 = sbr.rel (%p505) target = $region52
        $region51: #{arcface_forward.1} parent=39 // pred_region
          %s509 = ssub.s32 128, 128
          %510 = vsyncadd %s501, %s509
          %s511 = smul.addr %s30, 2
          %s512 = sadd.s32 %s31, %s511
          %s513 = smul.addr %s512, 128
          %s514 = scalar_lea.hbm %s6, %s513
          %s516 = sshll.u32 %s504, 4
          %s517 = int_to_ptr.vmem [resolvable:$true] %s516
          %519 = dma.vmem_to_hbm [thread:$0]  %s517, 128, %s514, %s501
        $region52: #{arcface_forward.1} parent=39 // pred_fallthru
          _
      $region40: #{arcface_forward.1} parent=5 // pred_fallthru
        _
      %p520 = scmp.le.s32.totalorder 2, %s21
      // Predicated region
      $region53: #{arcface_forward.1} parent=5 // pred_check
        %p521 = pneg %p520
      $region54: #{arcface_forward.1} parent=5 // pred_check_branch
        %523 = sbr.rel (%p521) target = $region56
      $region55: #{arcface_forward.1} parent=5 // pred_region
        %s524 = ssub.s32 %s21, 2
        // Predicated region
        $region57: #{arcface_forward.1} parent=55 // pred_check
          %p525 = pneg %p194
        $region58: #{arcface_forward.1} parent=55 // pred_check_branch
          %527 = sbr.rel (%p525) target = $region60
        $region59: #{arcface_forward.1} parent=55 // pred_region
          %s528 = sand.u32 %s179, 1
          %s529 = scalar_lea.sflag [#allocation5], %s528
          %s530 = sand.u32 %s179, 1
          %s531 = smul.addr %s530, 8
          %s532 = scalar_lea.vmem [#allocation4], %s531
          %533 = dma.done %s529, 128
        $region60: #{arcface_forward.1} parent=55 // pred_fallthru
          _
      $region56: #{arcface_forward.1} parent=5 // pred_fallthru
        _
    $region6: #{arcface_forward.1} parent=1 // loop_footer
      %s25 = sadd.s32 1, %s21
    $region7: #{arcface_forward.1} parent=1 // loop_footer_branch
      %20 = sbr.rel target = $region3
    $region8: #{arcface_forward.1} parent=1 // loop_exit
      _
    %534 = vsyncpa [#allocation5], 1
    %s535 = scalar_lea.sflag [#allocation5], 1
    %536 = vsyncpa %s535, 1

</llo_original>
